<compile_context>
chip_gen: v7x
topology: tpu7x:2x2x1
jax: 0.10.0
libtpu: 0.0.40
codegen_flags: <defaults>
</compile_context>

<pallas_src>
import functools

import jax
import jax.numpy as jnp
from jax.experimental import pallas as pl
from jax.experimental.pallas import tpu as pltpu


# ----------------------------------------------------------------------------
# Tiling choice: groups (of `ratio` target rows) per M-tile.
# ----------------------------------------------------------------------------
def _pick_groups_per_tile(seq_len_src, ratio):
    """Big enough to amortize per-grid-step overhead and fill the MXU M dim,
    small enough to keep the unrolled epilogue and VMEM footprint modest.
    Must divide seq_len_src and give an 8-aligned tile (or the full length)."""
    cap = max(1, min(128, 256 // ratio))
    if seq_len_src <= cap:
        return seq_len_src
    for g in range(cap, 0, -1):
        if seq_len_src % g == 0 and (ratio * g) % 8 == 0:
            return g
    return seq_len_src


# ----------------------------------------------------------------------------
# Fused kernel: relative-logits matmul + skew/mask window extraction.
# ----------------------------------------------------------------------------
def _make_fused_kernel(seq_len_src, ratio, groups_per_tile):
    l_s, r, g_per_tile = seq_len_src, ratio, groups_per_tile

    def kernel(q_ref, e_ref, o_ref, a_ref):
        # q_ref: (TILE_M, d), e_ref: (W, d)  with W = l_s + groups_per_tile
        # Relative logits for this tile on the MXU: (TILE_M, d) @ (W, d)^T.
        a_ref[...] = jax.lax.dot_general(
            q_ref[...],
            e_ref[...],
            (((1,), (1,)), ((), ())),
            preferred_element_type=jnp.float32,
        )
        # Skew + both triangular masks == per-group window extraction:
        # the rows of local group g read columns [G-1-g, G-1-g + l_s) of the
        # tile's logits.  All offsets are compile-time constants because the
        # m-tile dependent part of the offset was folded into the E operand.
        for g in range(g_per_tile):
            s = g_per_tile - 1 - g
            o_ref[g * r:(g + 1) * r, :] = (
                a_ref[g * r:(g + 1) * r, s:s + l_s].astype(o_ref.dtype)
            )

    return kernel


# ----------------------------------------------------------------------------
# Full forward.
# ----------------------------------------------------------------------------
@functools.partial(jax.jit, static_argnums=(3, 4, 5, 6))
def subsampled_relative_attention(
    q, e1, e2, num_heads, seq_len_src, seq_len_tgt, groups_per_tile=None
):
    bh, len_q, d = q.shape
    assert len_q == seq_len_tgt
    assert bh % num_heads == 0
    assert seq_len_tgt % seq_len_src == 0
    l_s, l_t = seq_len_src, seq_len_tgt
    r = l_t // l_s
    sz_b = bh // num_heads

    # Per-head relative-embedding table E[h] = [e1_h ; e2_h[1:] ; 0]  (2*l_s, d).
    e1h = e1.reshape(num_heads, l_s, d)
    e2h = e2.reshape(num_heads, l_s, d)
    pad = jnp.zeros((num_heads, 1, d), e1.dtype)
    e_tab = jnp.concatenate([e1h, e2h[:, 1:, :], pad], axis=1)     # (H, 2*l_s, d)

    if groups_per_tile is None:
        groups_per_tile = _pick_groups_per_tile(l_s, r)
    g_tile = groups_per_tile
    assert l_s % g_tile == 0
    tile_m = g_tile * r
    assert tile_m == l_t or tile_m % 8 == 0
    num_m = l_s // g_tile
    w = l_s + g_tile                                               # logits width / tile

    # Pre-window the table per m-tile so every in-kernel offset is static:
    # m-tile m (output groups [m*G, (m+1)*G)) needs table rows
    # [l_s - (m+1)*G, 2*l_s - m*G)   (length l_s + G, pad row never read).
    starts = l_s - (jnp.arange(num_m, dtype=jnp.int32) + 1) * g_tile      # (num_m,)
    idx = starts[:, None] + jnp.arange(w, dtype=jnp.int32)[None, :]       # (num_m, W)
    e_win = jnp.take(e_tab, idx, axis=1)                                  # (H, num_m, W, d)
    e_win = e_win.reshape(num_heads * num_m, w, d)

    kernel = _make_fused_kernel(l_s, r, g_tile)
    out = pl.pallas_call(
        kernel,
        out_shape=jax.ShapeDtypeStruct((bh, l_t, l_s), jnp.float32),
        grid=(num_heads, num_m, sz_b),                # batch innermost: E stays resident
        in_specs=[
            pl.BlockSpec((None, tile_m, d), lambda h, m, b: (b * num_heads + h, m, 0)),
            pl.BlockSpec((None, w, d), lambda h, m, b: (h * num_m + m, 0, 0)),
        ],
        out_specs=pl.BlockSpec(
            (None, tile_m, l_s), lambda h, m, b: (b * num_heads + h, m, 0)
        ),
        scratch_shapes=[pltpu.VMEM((tile_m, w), jnp.float32)],
        compiler_params=pltpu.CompilerParams(
            dimension_semantics=("parallel", "parallel", "arbitrary"),
            vmem_limit_bytes=32 * 1024 * 1024,
        ),
    )(q, e_win)
    return out


# ----------------------------------------------------------------------------
# Pure-JAX reference (literal transcription of the PyTorch forward) for testing.
# ----------------------------------------------------------------------------
def _skew(rel, seq_len_src, seq_len_tgt, front):
    b = rel.shape[0]
    rel = rel.reshape(b, seq_len_src, seq_len_tgt)
    pad_col = jnp.full((b, seq_len_src, 1), -100.0, rel.dtype)
    if front:
        rel = jnp.concatenate([pad_col, rel], axis=2)
    else:
        rel = jnp.concatenate([rel, pad_col], axis=2)
    bottom = seq_len_tgt - seq_len_src
    if bottom != 0:
        pad_rows = jnp.full((b, bottom, seq_len_tgt + 1), -100.0, rel.dtype)
        rel = jnp.concatenate([rel, pad_rows], axis=1)
    rel = rel.reshape(b, -1, seq_len_src)
    if front:
        rel = rel[:, 1:]
    rel = rel[:, :seq_len_tgt, :]
    return rel


def reference_forward(q, e1, e2, num_heads, seq_len_src, seq_len_tgt):
    bh, _, d = q.shape
    sz_b = bh // num_heads
    l_s, l_t = seq_len_src, seq_len_tgt
    r = l_t // l_s

    e1b = jnp.tile(e1[None], (sz_b, 1, 1)).reshape(bh, l_s, d)
    e2b = jnp.tile(e2[None], (sz_b, 1, 1)).reshape(bh, l_s, d)
    a1 = jnp.einsum("bld,bmd->blm", q, e1b)
    a2 = jnp.einsum("bld,bmd->blm", q, e2b)
    rel1 = _skew(a1, l_s, l_t, front=True)
    rel2 = _skew(a2, l_s, l_t, front=False)

    masks_down = jnp.triu(jnp.ones((l_s, l_s), jnp.uint8), k=0)[::-1, ::-1]
    masks_up = jnp.triu(jnp.ones((l_s, l_s), jnp.uint8), k=1)
    if r != 1:
        masks_down = jnp.repeat(masks_down, r, axis=0)
        masks_up = jnp.repeat(masks_up, r, axis=0)
    masks_down = masks_down.astype(bool)[None]
    masks_up = masks_up.astype(bool)[None]

    rel1 = jnp.where(masks_up, 0.0, rel1)
    rel2 = jnp.where(masks_down, 0.0, rel2)
    return rel1 + rel2


if __name__ == "__main__":
    # Several (seq_len_src, ratio) combinations, per the review's correctness
    # concern about fusing the skew in-kernel.  All shapes are small.
    configs = [
        # (head_dim, num_heads, seq_len_src, seq_len_tgt, sz_b, groups_per_tile)
        (32, 2, 4, 8, 2, None),   # ratio 2 (original small shape)
        (32, 2, 8, 8, 2, None),   # ratio 1
        (16, 3, 2, 8, 2, None),   # ratio 4
        (32, 2, 8, 16, 2, 4),     # ratio 2, forced 2 M-tiles (exercises tiling path)
    ]

    key = jax.random.PRNGKey(0)
    for (d, n_heads, l_s, l_t, sz_b, gpt) in configs:
        key, k1, k2, k3 = jax.random.split(key, 4)
        e1 = jax.random.normal(k1, (n_heads * l_s, d), jnp.float32)
        e2 = jax.random.normal(k2, (n_heads * l_s, d), jnp.float32)
        q = jax.random.normal(k3, (sz_b * n_heads, l_t, d), jnp.float32)

        out = subsampled_relative_attention(q, e1, e2, n_heads, l_s, l_t, gpt)
        out = jax.block_until_ready(out)

        ref = reference_forward(q, e1, e2, n_heads, l_s, l_t)
        assert out.shape == (sz_b * n_heads, l_t, l_s), out.shape
        assert out.dtype == jnp.float32
        assert jnp.allclose(out, ref, atol=1e-4, rtol=1e-4), (
            f"mismatch vs reference for config {(d, n_heads, l_s, l_t, sz_b, gpt)}"
        )

    print("KERNEL_OK")
</pallas_src>

<mosaic_0001>
module attributes {stable_mosaic.version = 11 : i64} {
  func.func @kernel(%arg0: i32, %arg1: i32, %arg2: i32, %arg3: memref<1x8x32xf32, #tpu.memory_space<vmem>>, %arg4: memref<1x8x32xf32, #tpu.memory_space<vmem>>, %arg5: memref<1x8x4xf32, #tpu.memory_space<vmem>>, %arg6: memref<8x8xf32, #tpu.memory_space<vmem>>) attributes {dimension_semantics = [#tpu.dimension_semantics<parallel>, #tpu.dimension_semantics<parallel>, #tpu.dimension_semantics<arbitrary>], iteration_bounds = array<i64: 2, 1, 2>, scalar_prefetch = 0 : i64, scratch_operands = 1 : i64, tpu.core_type = #tpu.core_type<tc>, window_params = [{transform_indices = @transform_0, window_bounds = array<i64: 1, 8, 32>}, {transform_indices = @transform_1, window_bounds = array<i64: 1, 8, 32>}, {transform_indices = @transform_2, window_bounds = array<i64: 1, 8, 4>}]} {
    %c0 = arith.constant 0 : index
    %c0_0 = arith.constant 0 : index
    %c0_1 = arith.constant 0 : index
    %0 = vector.load %arg3[%c0, %c0_0, %c0_1] : memref<1x8x32xf32, #tpu.memory_space<vmem>>, vector<1x8x32xf32>
    %1 = vector.shape_cast %0 : vector<1x8x32xf32> to vector<8x32xf32>
    %c0_2 = arith.constant 0 : index
    %c0_3 = arith.constant 0 : index
    %c0_4 = arith.constant 0 : index
    %2 = vector.load %arg4[%c0_2, %c0_3, %c0_4] : memref<1x8x32xf32, #tpu.memory_space<vmem>>, vector<1x8x32xf32>
    %3 = vector.shape_cast %2 : vector<1x8x32xf32> to vector<8x32xf32>
    %cst = arith.constant dense<0.000000e+00> : vector<8x8xf32>
    %4 = tpu.matmul %1, %3, %cst {dimension_numbers = #tpu.dot_dimension_numbers<[1], [1], [0], [0], [0, 0, 1, 0], [], []>} : vector<8x32xf32>, vector<8x32xf32>, vector<8x8xf32> -> vector<8x8xf32>
    %c0_5 = arith.constant 0 : index
    %c0_6 = arith.constant 0 : index
    %5 = vector.load %arg6[%c0_5, %c0_6] : memref<8x8xf32, #tpu.memory_space<vmem>>, vector<8x8xf32>
    tpu.vector_store %arg6[%c0_5, %c0_6], %4 {strides = array<i32>} : memref<8x8xf32, #tpu.memory_space<vmem>>, vector<8x8xf32>,
    %c0_7 = arith.constant 0 : index
    %c3 = arith.constant 3 : index
    %6 = vector.load %arg6[%c0_7, %c3] : memref<8x8xf32, #tpu.memory_space<vmem>>, vector<2x4xf32>
    %c0_8 = arith.constant 0 : index
    %c0_9 = arith.constant 0 : index
    %c0_10 = arith.constant 0 : index
    %7 = vector.load %arg5[%c0_8, %c0_9, %c0_10] : memref<1x8x4xf32, #tpu.memory_space<vmem>>, vector<1x2x4xf32>
    %8 = vector.shape_cast %7 : vector<1x2x4xf32> to vector<2x4xf32>
    %9 = vector.shape_cast %6 : vector<2x4xf32> to vector<1x2x4xf32>
    tpu.vector_store %arg5[%c0_8, %c0_9, %c0_10], %9 {strides = array<i32>} : memref<1x8x4xf32, #tpu.memory_space<vmem>>, vector<1x2x4xf32>,
    %c2 = arith.constant 2 : index
    %c2_11 = arith.constant 2 : index
    %10 = vector.load %arg6[%c2, %c2_11] : memref<8x8xf32, #tpu.memory_space<vmem>>, vector<2x4xf32>
    %c0_12 = arith.constant 0 : index
    %c2_13 = arith.constant 2 : index
    %c0_14 = arith.constant 0 : index
    %11 = vector.load %arg5[%c0_12, %c2_13, %c0_14] : memref<1x8x4xf32, #tpu.memory_space<vmem>>, vector<1x2x4xf32>
    %12 = vector.shape_cast %11 : vector<1x2x4xf32> to vector<2x4xf32>
    %13 = vector.shape_cast %10 : vector<2x4xf32> to vector<1x2x4xf32>
    tpu.vector_store %arg5[%c0_12, %c2_13, %c0_14], %13 {strides = array<i32>} : memref<1x8x4xf32, #tpu.memory_space<vmem>>, vector<1x2x4xf32>,
    %c4 = arith.constant 4 : index
    %c1 = arith.constant 1 : index
    %14 = vector.load %arg6[%c4, %c1] : memref<8x8xf32, #tpu.memory_space<vmem>>, vector<2x4xf32>
    %c0_15 = arith.constant 0 : index
    %c4_16 = arith.constant 4 : index
    %c0_17 = arith.constant 0 : index
    %15 = vector.load %arg5[%c0_15, %c4_16, %c0_17] : memref<1x8x4xf32, #tpu.memory_space<vmem>>, vector<1x2x4xf32>
    %16 = vector.shape_cast %15 : vector<1x2x4xf32> to vector<2x4xf32>
    %17 = vector.shape_cast %14 : vector<2x4xf32> to vector<1x2x4xf32>
    tpu.vector_store %arg5[%c0_15, %c4_16, %c0_17], %17 {strides = array<i32>} : memref<1x8x4xf32, #tpu.memory_space<vmem>>, vector<1x2x4xf32>,
    %c6 = arith.constant 6 : index
    %c0_18 = arith.constant 0 : index
    %18 = vector.load %arg6[%c6, %c0_18] : memref<8x8xf32, #tpu.memory_space<vmem>>, vector<2x4xf32>
    %c0_19 = arith.constant 0 : index
    %c6_20 = arith.constant 6 : index
    %c0_21 = arith.constant 0 : index
    %19 = vector.load %arg5[%c0_19, %c6_20, %c0_21] : memref<1x8x4xf32, #tpu.memory_space<vmem>>, vector<1x2x4xf32>
    %20 = vector.shape_cast %19 : vector<1x2x4xf32> to vector<2x4xf32>
    %21 = vector.shape_cast %18 : vector<2x4xf32> to vector<1x2x4xf32>
    tpu.vector_store %arg5[%c0_19, %c6_20, %c0_21], %21 {strides = array<i32>} : memref<1x8x4xf32, #tpu.memory_space<vmem>>, vector<1x2x4xf32>,
    return
  }
  func.func @transform_0(%arg0: i32, %arg1: i32, %arg2: i32) -> (i32, i32, i32) {
    %c2_i32 = arith.constant 2 : i32
    %0 = arith.muli %arg2, %c2_i32 : i32
    %1 = arith.addi %0, %arg0 : i32
    %c0_i32 = arith.constant 0 : i32
    %c0_i32_0 = arith.constant 0 : i32
    return %1, %arg1, %c0_i32 : i32, i32, i32
  }
  func.func @transform_1(%arg0: i32, %arg1: i32, %arg2: i32) -> (i32, i32, i32) {
    %c1_i32 = arith.constant 1 : i32
    %0 = arith.muli %arg0, %c1_i32 : i32
    %1 = arith.addi %0, %arg1 : i32
    %c0_i32 = arith.constant 0 : i32
    %c0_i32_0 = arith.constant 0 : i32
    %c0_i32_1 = arith.constant 0 : i32
    return %1, %c0_i32, %c0_i32_0 : i32, i32, i32
  }
  func.func @transform_2(%arg0: i32, %arg1: i32, %arg2: i32) -> (i32, i32, i32) {
    %c2_i32 = arith.constant 2 : i32
    %0 = arith.muli %arg2, %c2_i32 : i32
    %1 = arith.addi %0, %arg0 : i32
    %c0_i32 = arith.constant 0 : i32
    %c0_i32_0 = arith.constant 0 : i32
    return %1, %arg1, %c0_i32 : i32, i32, i32
  }
}

</mosaic_0001>

<llo_original>
// kernel: subsampled_relative_attention.1
$region0: #{subsampled_relative_attention.1}
  #allocation0 [shape = 'u32[]', space=smem, size = 0x4, offset = 0x4, fixed_abs, tag = 'smem constant byte address 0x4 - core index']
  #allocation1 [shape = 'u32[144,128]{1,0:T(1,128)}', space=vmem, size = 0x12000, scoped, tag = 'internal scratch']
  #allocation2 [shape = 'f32[8,8]{1,0:T(8,128)}', space=vmem, size = 0x1000, scoped, tag = 'scratch operand']
  %s0 = inlined_call_operand.vmem [shape: f32[4,8,32], index: 0, kind: input, shape index: {}]
  %s1 = inlined_call_operand.vmem [shape: f32[2,8,32], index: 1, kind: input, shape index: {}]
  %s2 = inlined_call_operand.vmem [shape: f32[4,8,4], index: 2, kind: output, shape index: {}]
  %s3 = sld [smem:[#allocation0]]
  $region41: #{subsampled_relative_attention.1} parent=0
    _
  %s5 = ssub.s32 1, %s3
  %s6 = scalar_select 0, %s5, %s3
  loop: start=0, step=1, limit=6
  $region2: #{subsampled_relative_attention.1} parent=0 // loop_pre_header
    _
  $region3: #{subsampled_relative_attention.1} parent=0 // loop_header
    %s8 = sphi 0, %s12
    %p9 = scmp.ge.s32.totalorder %s8, 6
    %s15 = sphi 0, %s34
    %s16 = sphi 0, %s30
    %s17 = sphi 0, %s26
    %s18 = sphi 0, %s15
    %s19 = sphi 0, %s16
    %s20 = sphi 0, %s17
    %s21 = sphi 0, %s18
    %s22 = sphi 0, %s19
    %s23 = sphi 0, %s20
    %s43 = sphi 0, %s45
    %s46 = sphi 0, %s43
    %s47 = sphi 0, %s46
    %s63 = sphi 0, %s47
    %s71 = sphi 0, %s73
    %s74 = sphi 0, %s71
    %s75 = sphi 0, %s74
    %s91 = sphi 0, %s75
    %s103 = sphi 0, %s105
    %s106 = sphi 0, %s103
    %s107 = sphi 0, %s106
    %s123 = sphi 0, %s107
  $region4: #{subsampled_relative_attention.1} parent=0 // loop_header_branch
    %11 = sbr.rel (%p9) target = $region8
  $region5: #{subsampled_relative_attention.1} parent=0 // loop_body
    %s13 = ssub.s32 %s8, 1
    %s14 = ssub.s32 %s8, 2
    %s24 = sadd.s32 1, %s17
    %p25 = scmp.ge.s32.totalorder %s24, 2
    %s26 = scalar_select %p25, 0, %s24
    %s27 = sadd.s32 1, %s16
    %s28 = scalar_select %p25, %s27, %s16
    %p29 = scmp.ge.s32.totalorder %s28, 1
    %s30 = scalar_select %p29, 0, %s28
    %s31 = sadd.s32 1, %s15
    %s32 = scalar_select %p29, %s31, %s15
    %p33 = scmp.ge.s32.totalorder %s32, 2
    %s34 = scalar_select %p33, 0, %s32
    %s35 = smul.u32 %s17, 2
    %s36 = sadd.s32 %s35, %s15
    %s37 = smul.u32 %s26, 2
    %s38 = sadd.s32 %s37, %s34
    %s39 = ssub.s32 %s36, %s38
    %s40 = ssub.s32 %s16, %s30
    %s41 = sor.u32 %s39, %s40
    %p42 = scmp.eq.s32.totalorder %s41, 0
    %s44 = sadd.s32 %s43, 1
    %s45 = scalar_select %p42, %s43, %s44
    %p48 = pneg %p42
    %p49 = scmp.eq.s32.totalorder %s8, 3
    %p50 = por %p48, %p49
    %p51 = scmp.ne.s32.totalorder %s43, %s46
    %p52 = scmp.eq.s32.totalorder %s8, 0
    %p53 = por %p51, %p52
    %p54 = scmp.ne.s32.totalorder %s43, %s46
    %p55 = scmp.eq.s32.totalorder %s13, 3
    %p56 = por %p54, %p55
    %p57 = scmp.ne.s32.totalorder %s46, %s47
    %p58 = scmp.eq.s32.totalorder %s13, 0
    %p59 = por %p57, %p58
    %p60 = scmp.ne.s32.totalorder %s46, %s47
    %p61 = scmp.eq.s32.totalorder %s14, 3
    %p62 = por %p60, %p61
    %p64 = scmp.ne.s32.totalorder %s47, %s63
    %p65 = scmp.eq.s32.totalorder %s14, 0
    %p66 = por %p64, %p65
    %s67 = sadd.s32 %s15, %s16
    %s68 = sadd.s32 %s34, %s30
    %s69 = ssub.s32 %s67, %s68
    %p70 = scmp.eq.s32.totalorder %s69, 0
    %s72 = sadd.s32 %s71, 1
    %s73 = scalar_select %p70, %s71, %s72
    %p76 = pneg %p70
    %p77 = scmp.eq.s32.totalorder %s8, 3
    %p78 = por %p76, %p77
    %p79 = scmp.ne.s32.totalorder %s71, %s74
    %p80 = scmp.eq.s32.totalorder %s8, 0
    %p81 = por %p79, %p80
    %p82 = scmp.ne.s32.totalorder %s71, %s74
    %p83 = scmp.eq.s32.totalorder %s13, 3
    %p84 = por %p82, %p83
    %p85 = scmp.ne.s32.totalorder %s74, %s75
    %p86 = scmp.eq.s32.totalorder %s13, 0
    %p87 = por %p85, %p86
    %p88 = scmp.ne.s32.totalorder %s74, %s75
    %p89 = scmp.eq.s32.totalorder %s14, 3
    %p90 = por %p88, %p89
    %p92 = scmp.ne.s32.totalorder %s75, %s91
    %p93 = scmp.eq.s32.totalorder %s14, 0
    %p94 = por %p92, %p93
    %s95 = smul.u32 %s17, 2
    %s96 = sadd.s32 %s95, %s15
    %s97 = smul.u32 %s26, 2
    %s98 = sadd.s32 %s97, %s34
    %s99 = ssub.s32 %s96, %s98
    %s100 = ssub.s32 %s16, %s30
    %s101 = sor.u32 %s99, %s100
    %p102 = scmp.eq.s32.totalorder %s101, 0
    %s104 = sadd.s32 %s103, 1
    %s105 = scalar_select %p102, %s103, %s104
    %p108 = pneg %p102
    %p109 = scmp.eq.s32.totalorder %s8, 3
    %p110 = por %p108, %p109
    %p111 = scmp.ne.s32.totalorder %s103, %s106
    %p112 = scmp.eq.s32.totalorder %s8, 0
    %p113 = por %p111, %p112
    %p114 = scmp.ne.s32.totalorder %s103, %s106
    %p115 = scmp.eq.s32.totalorder %s13, 3
    %p116 = por %p114, %p115
    %p117 = scmp.ne.s32.totalorder %s106, %s107
    %p118 = scmp.eq.s32.totalorder %s13, 0
    %p119 = por %p117, %p118
    %p120 = scmp.ne.s32.totalorder %s106, %s107
    %p121 = scmp.eq.s32.totalorder %s14, 3
    %p122 = por %p120, %p121
    %p124 = scmp.ne.s32.totalorder %s107, %s123
    %p125 = scmp.eq.s32.totalorder %s14, 0
    %p126 = por %p124, %p125
    %p127 = scmp.le.s32.totalorder 1, %s8
    %p128 = scmp.lt.s32.totalorder %s8, 5
    %p129 = pnand %p127, %p128
    %p130 = pneg %p129
    // Predicated region
    $region9: #{subsampled_relative_attention.1} parent=5 // pred_check
      _
    $region10: #{subsampled_relative_attention.1} parent=5 // pred_check_branch
      %132 = sbr.rel (%p129) target = $region12
    $region11: #{subsampled_relative_attention.1} parent=5 // pred_region
      %s133 = ssub.s32 %s8, 1
    $region12: #{subsampled_relative_attention.1} parent=5 // pred_fallthru
      _
    %p134 = scmp.lt.s32.totalorder %s8, 4
    // Predicated region
    $region13: #{subsampled_relative_attention.1} parent=5 // pred_check
      %p135 = pneg %p134
    $region14: #{subsampled_relative_attention.1} parent=5 // pred_check_branch
      %137 = sbr.rel (%p135) target = $region16
    $region15: #{subsampled_relative_attention.1} parent=5 // pred_region
      // Predicated region
      $region17: #{subsampled_relative_attention.1} parent=15 // pred_check
        %p138 = pneg %p53
      $region18: #{subsampled_relative_attention.1} parent=15 // pred_check_branch
        %140 = sbr.rel (%p138) target = $region20
      $region19: #{subsampled_relative_attention.1} parent=15 // pred_region
        %s141 = smul.u32 %s17, 2
        %s142 = sadd.s32 %s141, %s15
        %p143 = scmp.lt.s32.totalorder %s142, 3
        %s144 = scalar_select %p143, %s142, 3
        %p145 = scmp.lt.s32.totalorder %s16, 0
        %s146 = scalar_select %p145, %s16, 0
        %s147 = sadd.s32 %s146, %s144
        %s148 = smul.addr %s147, 8
        %s149 = scalar_lea.vmem %s0, %s148
        %s150 = smul.u32 %s17, 2
        %s151 = sadd.s32 %s150, %s15
      $region20: #{subsampled_relative_attention.1} parent=15 // pred_fallthru
        _
      // Predicated region
      $region21: #{subsampled_relative_attention.1} parent=15 // pred_check
        %p152 = pneg %p81
      $region22: #{subsampled_relative_attention.1} parent=15 // pred_check_branch
        %154 = sbr.rel (%p152) target = $region24
      $region23: #{subsampled_relative_attention.1} parent=15 // pred_region
        %s155 = sadd.s32 %s15, %s16
        %p156 = scmp.lt.s32.totalorder %s155, 1
        %s157 = scalar_select %p156, %s155, 1
        %s158 = smul.addr %s157, 8
        %s159 = scalar_lea.vmem %s1, %s158
        %s160 = sadd.s32 %s15, %s16
      $region24: #{subsampled_relative_attention.1} parent=15 // pred_fallthru
        _
    $region16: #{subsampled_relative_attention.1} parent=5 // pred_fallthru
      _
    %p161 = scmp.le.s32.totalorder 1, %s8
    %p162 = scmp.lt.s32.totalorder %s8, 5
    %p163 = pnand %p161, %p162
    %p164 = pneg %p163
    // Predicated region
    $region25: #{subsampled_relative_attention.1} parent=5 // pred_check
      _
    $region26: #{subsampled_relative_attention.1} parent=5 // pred_check_branch
      %166 = sbr.rel (%p163) target = $region28
    $region27: #{subsampled_relative_attention.1} parent=5 // pred_region
      %s167 = ssub.s32 %s8, 1
      %s168 = smul.u32 %s20, 2
      %s169 = sadd.s32 %s168, %s18
      %p170 = scmp.lt.s32.totalorder %s169, 3
      %s171 = scalar_select %p170, %s169, 3
      %p172 = scmp.lt.s32.totalorder %s19, 0
      %s173 = scalar_select %p172, %s19, 0
      %s174 = sadd.s32 %s173, %s171
      %s175 = smul.addr %s174, 8
      %s176 = scalar_lea.vmem %s0, %s175
      %p177 = pneg %p59
      %p178 = pneg %p56
      %s179 = sadd.s32 %s18, %s19
      %p180 = scmp.lt.s32.totalorder %s179, 1
      %s181 = scalar_select %p180, %s179, 1
      %s182 = smul.addr %s181, 8
      %s183 = scalar_lea.vmem %s1, %s182
      %p184 = pneg %p87
      %p185 = pneg %p84
      %p186 = pneg %p119
      %p187 = pneg %p116
      %s188 = smul.u32 %s20, 2
      %s189 = sadd.s32 %s188, %s18
      %p190 = scmp.lt.s32.totalorder %s189, 3
      %s191 = scalar_select %p190, %s189, 3
      %p192 = scmp.lt.s32.totalorder %s19, 0
      %s193 = scalar_select %p192, %s19, 0
      %s194 = sadd.s32 %s193, %s191
      %s195 = smul.addr %s194, 8
      %s196 = scalar_lea.vmem %s2, %s195
      %s197 = smul.u32 %s20, 2
      %s198 = sadd.s32 %s197, %s18
      %p199 = scmp.lt.s32.totalorder %s198, 3
      %s200 = scalar_select %p199, %s198, 3
      %p201 = scmp.lt.s32.totalorder %s19, 0
      %s202 = scalar_select %p201, %s19, 0
      %s203 = sadd.s32 %s202, %s200
      %s204 = smul.addr %s203, 8
      %s205 = scalar_lea.vmem %s0, %s204
      %s206 = smul.u32 %s20, 2
      %s207 = sadd.s32 %s206, %s18
      %s208 = sadd.s32 %s18, %s19
      %p209 = scmp.lt.s32.totalorder %s208, 1
      %s210 = scalar_select %p209, %s208, 1
      %s211 = smul.addr %s210, 8
      %s212 = scalar_lea.vmem %s1, %s211
      %s213 = sadd.s32 %s18, %s19
      %s214 = smul.u32 %s20, 2
      %s215 = sadd.s32 %s214, %s18
      %p216 = scmp.lt.s32.totalorder %s215, 3
      %s217 = scalar_select %p216, %s215, 3
      %p218 = scmp.lt.s32.totalorder %s19, 0
      %s219 = scalar_select %p218, %s19, 0
      %s220 = sadd.s32 %s219, %s217
      %s221 = smul.addr %s220, 8
      %s222 = scalar_lea.vmem %s2, %s221
      %s223 = smul.u32 %s20, 2
      %s224 = sadd.s32 %s223, %s18
      %v225 = vld [vmem:[%s205] sm:$0xff]
      %v226 = vld [vmem:[%s212] sm:$0xff]
      %vm227 = vcmask 261120
      %v229 = vsel %vm227, %v225, 0
      %v232 = vsel %vm227, %v226, 0
      %234 = vmatprep.subr.mxu0 0.0
      %235 = vmatpush1.xpose.msra.mxu0 %v232
      %236 = vmatprep.subr.mxu0 0.0
      %237 = vmatpush1.xpose.msra.mxu0 0.0
      %238 = vmatprep.subr.mxu0 0.0
      %239 = vmatpush1.xpose.msra.mxu0 0.0
      %240 = vmatprep.subr.mxu0 0.0
      %241 = vmatpush1.xpose.msra.mxu0 0.0
      %242 = vmatprep.subr.mxu0 0.0
      %243 = vmatpush1.xpose.msra.mxu0 0.0
      %244 = vmatprep.subr.mxu0 0.0
      %245 = vmatpush1.xpose.msra.mxu0 0.0
      %246 = vmatprep.subr.mxu0 0.0
      %247 = vmatpush1.xpose.msra.mxu0 0.0
      %248 = vmatprep.subr.mxu0 0.0
      %249 = vmatpush1.xpose.msra.mxu0 0.0
      %250 = vmatprep.subr.mxu0 0.0
      %251 = vmatpush1.xpose.msra.mxu0 0.0
      %252 = vmatprep.subr.mxu0 0.0
      %253 = vmatpush1.xpose.msra.mxu0 0.0
      %254 = vmatprep.subr.mxu0 0.0
      %255 = vmatpush1.xpose.msra.mxu0 0.0
      %256 = vmatprep.subr.mxu0 0.0
      %257 = vmatpush1.xpose.msra.mxu0 0.0
      %258 = vmatprep.subr.mxu0 0.0
      %259 = vmatpush1.xpose.msra.mxu0 0.0
      %260 = vmatprep.subr.mxu0 0.0
      %261 = vmatpush1.xpose.msra.mxu0 0.0
      %262 = vmatprep.subr.mxu0 0.0
      %263 = vmatpush1.xpose.msra.mxu0 0.0
      %264 = vmatprep.subr.mxu0 0.0
      %265 = vmatpush1.xpose.msra.mxu0 0.0
      %266 = vmatprep.subr.mxu0 0.0
      %267 = vmatpush1.xpose.msra.mxu0 0.0
      %268 = vmatprep.subr.mxu0 0.0
      %269 = vmatpush1.xpose.msra.mxu0 0.0
      %270 = vmatprep.subr.mxu0 0.0
      %271 = vmatpush1.xpose.msra.mxu0 0.0
      %272 = vmatprep.subr.mxu0 0.0
      %273 = vmatpush1.xpose.msra.mxu0 0.0
      %274 = vmatprep.subr.mxu0 0.0
      %275 = vmatpush1.xpose.msra.mxu0 0.0
      %276 = vmatprep.subr.mxu0 0.0
      %277 = vmatpush1.xpose.msra.mxu0 0.0
      %278 = vmatprep.subr.mxu0 0.0
      %279 = vmatpush1.xpose.msra.mxu0 0.0
      %280 = vmatprep.subr.mxu0 0.0
      %281 = vmatpush1.xpose.msra.mxu0 0.0
      %282 = vmatprep.subr.mxu0 0.0
      %283 = vmatpush1.xpose.msra.mxu0 0.0
      %284 = vmatprep.subr.mxu0 0.0
      %285 = vmatpush1.xpose.msra.mxu0 0.0
      %286 = vmatprep.subr.mxu0 0.0
      %287 = vmatpush1.xpose.msra.mxu0 0.0
      %288 = vmatprep.subr.mxu0 0.0
      %289 = vmatpush1.xpose.msra.mxu0 0.0
      %290 = vmatprep.subr.mxu0 0.0
      %291 = vmatpush1.xpose.msra.mxu0 0.0
      %292 = vmatprep.subr.mxu0 0.0
      %293 = vmatpush1.xpose.msra.mxu0 0.0
      %294 = vmatprep.subr.mxu0 0.0
      %295 = vmatpush1.xpose.msra.mxu0 0.0
      %296 = vmatprep.subr.mxu0 0.0
      %297 = vmatpush1.xpose.msra.mxu0 0.0
      %298 = vmatprep.mubr.f32.mxu0 0.0
      %299 = vmatmul.mubr.f32.gmra.mrb[0].mxu0 %v229
      %v300 = vpop.f32.mrb[0].mxu0
      %v301 = vadd.f32 0.0, %v300
      %v302 = vpop.f32.mrb[0].mxu0
      %303 = vdwg.mxu0
      %vm304 = vcmask 64512
      %305 = vst.msk [vmem:[#allocation2] sm:$0xff] %vm304, %v301
      %v306 = vld [vmem:[#allocation2] sm:$0x3]
      %308 = vrot.lane.b32.xlu0 %v306, 125
      %v309 = vpop.permute.xlu0 %308
      %vm311 = vcmask 25600
      %312 = vst.msk [vmem:[%s222] sm:$0x3] %vm311, %v309
      %v313 = vld [vmem:[#allocation2 + $0x2] sm:$0x3]
      %315 = vrot.lane.b32.xlu0 %v313, 126
      %v316 = vpop.permute.xlu0 %315
      %318 = vst.msk [vmem:[%s222 + $0x2] sm:$0x3] %vm311, %v316
      %v319 = vld [vmem:[#allocation2 + $0x4] sm:$0x3]
      %321 = vrot.lane.b32.xlu0 %v319, 127
      %v322 = vpop.permute.xlu0 %321
      %324 = vst.msk [vmem:[%s222 + $0x4] sm:$0x3] %vm311, %v322
      %v325 = vld [vmem:[#allocation2 + $0x6] sm:$0x3]
      %326 = vst.msk [vmem:[%s222 + $0x6] sm:$0x3] %vm311, %v325
      %s327 = smul.u32 %s20, 2
      %s328 = sadd.s32 %s327, %s18
      %p329 = scmp.lt.s32.totalorder %s328, 3
      %s330 = scalar_select %p329, %s328, 3
      %p331 = scmp.lt.s32.totalorder %s19, 0
      %s332 = scalar_select %p331, %s19, 0
      %s333 = sadd.s32 %s332, %s330
      %s334 = smul.addr %s333, 8
      %s335 = scalar_lea.vmem %s2, %s334
      // Predicated region
      $region29: #{subsampled_relative_attention.1} parent=27 // pred_check
        %p336 = pneg %p116
      $region30: #{subsampled_relative_attention.1} parent=27 // pred_check_branch
        %338 = sbr.rel (%p336) target = $region32
      $region31: #{subsampled_relative_attention.1} parent=27 // pred_region
        %s339 = smul.u32 %s20, 2
        %s340 = sadd.s32 %s339, %s18
      $region32: #{subsampled_relative_attention.1} parent=27 // pred_fallthru
        _
    $region28: #{subsampled_relative_attention.1} parent=5 // pred_fallthru
      _
    %p341 = scmp.le.s32.totalorder 2, %s8
    // Predicated region
    $region33: #{subsampled_relative_attention.1} parent=5 // pred_check
      %p342 = pneg %p341
    $region34: #{subsampled_relative_attention.1} parent=5 // pred_check_branch
      %344 = sbr.rel (%p342) target = $region36
    $region35: #{subsampled_relative_attention.1} parent=5 // pred_region
      %s345 = ssub.s32 %s8, 2
      // Predicated region
      $region37: #{subsampled_relative_attention.1} parent=35 // pred_check
        %p346 = pneg %p122
      $region38: #{subsampled_relative_attention.1} parent=35 // pred_check_branch
        %348 = sbr.rel (%p346) target = $region40
      $region39: #{subsampled_relative_attention.1} parent=35 // pred_region
        %s349 = smul.u32 %s23, 2
        %s350 = sadd.s32 %s349, %s21
        %p351 = scmp.lt.s32.totalorder %s350, 3
        %s352 = scalar_select %p351, %s350, 3
        %p353 = scmp.lt.s32.totalorder %s22, 0
        %s354 = scalar_select %p353, %s22, 0
        %s355 = sadd.s32 %s354, %s352
        %s356 = smul.addr %s355, 8
        %s357 = scalar_lea.vmem %s2, %s356
      $region40: #{subsampled_relative_attention.1} parent=35 // pred_fallthru
        _
    $region36: #{subsampled_relative_attention.1} parent=5 // pred_fallthru
      _
  $region6: #{subsampled_relative_attention.1} parent=0 // loop_footer
    %s12 = sadd.s32 1, %s8
  $region7: #{subsampled_relative_attention.1} parent=0 // loop_footer_branch
    %7 = sbr.rel target = $region3
  $region8: #{subsampled_relative_attention.1} parent=0 // loop_exit
    _

</llo_original>
